<compile_context>
chip_gen: v7x
topology: tpu7x:2x2x1
jax: 0.10.0
libtpu: 0.0.40
codegen_flags: <defaults>
</compile_context>

<pallas_src>
import jax
import jax.numpy as jnp
from jax.experimental import pallas as pl
from jax.experimental.pallas import tpu as pltpu


def _round_up(n, m):
    return ((n + m - 1) // m) * m


def _classifier_kernel(x_ref, w1_ref, b1_ref, w2_ref, b2_ref, out_ref, feat_ref):
    # fc1 on the MXU; bias + ReLU epilogue in f32 on the VPU.
    h = jnp.dot(x_ref[...], w1_ref[...], preferred_element_type=jnp.float32)
    h = jnp.maximum(h + b1_ref[...].astype(jnp.float32), 0.0)
    feat_ref[...] = h.astype(feat_ref.dtype)

    # fc2: feed the LHS from the stored activation so the separate f32
    # temporary is not kept live across both matmuls.
    o = jnp.dot(feat_ref[...], w2_ref[...], preferred_element_type=jnp.float32)
    out_ref[...] = (o + b2_ref[...].astype(jnp.float32)).astype(out_ref.dtype)


def classifier_forward(x, w1, b1, w2, b2, *, tile_b=1024):
    """x: [B, D_in]; w1: [D_in, H]; b1: [H]; w2: [H, C]; b2: [C].

    Returns (logits [B, C], feat [B, H]) matching Classifier.forward.
    """
    B, D_in = x.shape
    H = w1.shape[1]
    C = w2.shape[1]
    dtype = x.dtype

    LANE, SUB = 128, 8
    a_bytes = jnp.dtype(dtype).itemsize
    w_bytes = jnp.dtype(w1.dtype).itemsize
    # On-chip (VMEM) layouts are still lane/sublane padded internally; use the
    # padded dims only for VMEM accounting, never for HBM shapes.
    D_v, H_v, C_v = (_round_up(d, LANE) for d in (D_in, H, C))

    # ---- batch tile selection ----
    tile_b = int(tile_b)
    if B >= 2 * SUB:
        # Guarantee at least 2 grid steps so ("parallel",) can shard the batch
        # across v7x's two TensorCores (no effect on v5e/v6e correctness/perf).
        tile_b = min(tile_b, _round_up(pl.cdiv(B, 2), SUB))
    tile_b = _round_up(max(SUB, min(tile_b, _round_up(B, SUB))), SUB)

    def act_bytes(tb):  # double-buffered input + output tiles
        return 2 * tb * (D_v + H_v + C_v) * a_bytes

    while tile_b > SUB and act_bytes(tile_b) > 24 * 2**20:
        tile_b = _round_up(tile_b // 2, SUB)

    B_p = _round_up(B, tile_b)
    grid = (B_p // tile_b,)

    # ---- VMEM budget: exact-ish need + headroom (weights counted at 2 bufs to
    # stay safe if the single-buffer request is not honored). ----
    wgt_bytes = (D_v * H_v + H_v * C_v) * w_bytes + 2 * SUB * (H_v + C_v) * w_bytes
    need = act_bytes(tile_b) + 2 * wgt_bytes
    vmem_limit = int(min(40 * 2**20, max(16 * 2**20, int(1.25 * need) + (2 << 20))))
    # TODO(synk): for hidden/input sizes where the weights no longer fit
    # resident in VMEM, add a grid axis over the contraction dim with a
    # pl.when-guarded f32 accumulator instead of full-array weight blocks.

    # Only the batch axis ever gets padded (and only when it doesn't divide tile_b).
    x_p = x if B_p == B else jnp.pad(x, ((0, B_p - B), (0, 0)))
    b1_2d = b1.reshape(1, H)
    b2_2d = b2.reshape(1, C)

    flops = 2 * B_p * (D_in * H + H * C)
    bytes_accessed = (
        a_bytes * (x_p.size + B_p * (C + H))
        + w_bytes * (w1.size + b1.size + w2.size + b2.size)
    )

    def build(single_buffer_weights):
        if single_buffer_weights:
            def w_spec(shape):
                return pl.BlockSpec(shape, lambda i: (0, 0),
                                    pipeline_mode=pl.Buffered(1))
        else:
            def w_spec(shape):
                return pl.BlockSpec(shape, lambda i: (0, 0))

        return pl.pallas_call(
            _classifier_kernel,
            out_shape=(
                jax.ShapeDtypeStruct((B_p, C), dtype),   # logits
                jax.ShapeDtypeStruct((B_p, H), dtype),   # feat
            ),
            grid=grid,
            in_specs=[
                pl.BlockSpec((tile_b, D_in), lambda i: (i, 0)),  # x: blocked batch
                w_spec((D_in, H)),                               # w1: resident
                w_spec((1, H)),                                  # b1: resident
                w_spec((H, C)),                                  # w2: resident
                w_spec((1, C)),                                  # b2: resident
            ],
            out_specs=(
                pl.BlockSpec((tile_b, C), lambda i: (i, 0)),
                pl.BlockSpec((tile_b, H), lambda i: (i, 0)),
            ),
            compiler_params=pltpu.CompilerParams(
                dimension_semantics=("parallel",),
                vmem_limit_bytes=vmem_limit,
            ),
            cost_estimate=pl.CostEstimate(
                flops=flops, bytes_accessed=bytes_accessed, transcendentals=0
            ),
        )

    try:
        out_p, feat_p = build(hasattr(pl, "Buffered"))(x_p, w1, b1_2d, w2, b2_2d)
    except Exception:
        # Fallback: default (double-buffered) weight blocks.
        out_p, feat_p = build(False)(x_p, w1, b1_2d, w2, b2_2d)

    if B_p != B:
        out_p, feat_p = out_p[:B], feat_p[:B]
    return out_p, feat_p


if __name__ == "__main__":
    # Small shapes consistent with Classifier(input_size, hidden_size, num_classes).
    batch, input_size, hidden_size, num_classes = 8, 32, 64, 8

    key = jax.random.PRNGKey(0)
    kx, kw1, kb1, kw2, kb2 = jax.random.split(key, 5)

    x = jax.random.normal(kx, (batch, input_size), dtype=jnp.float32)

    # PyTorch Linear default init: U(-1/sqrt(fan_in), 1/sqrt(fan_in)).
    lim1 = 1.0 / jnp.sqrt(jnp.float32(input_size))
    lim2 = 1.0 / jnp.sqrt(jnp.float32(hidden_size))
    w1 = jax.random.uniform(kw1, (input_size, hidden_size), jnp.float32, -lim1, lim1)
    b1 = jax.random.uniform(kb1, (hidden_size,), jnp.float32, -lim1, lim1)
    w2 = jax.random.uniform(kw2, (hidden_size, num_classes), jnp.float32, -lim2, lim2)
    b2 = jax.random.uniform(kb2, (num_classes,), jnp.float32, -lim2, lim2)

    out, feat = classifier_forward(x, w1, b1, w2, b2)
    jax.block_until_ready((out, feat))

    # Pure-JAX reference check.
    feat_ref = jnp.maximum(x @ w1 + b1, 0.0)
    out_ref = feat_ref @ w2 + b2
    assert out.shape == (batch, num_classes) and feat.shape == (batch, hidden_size)
    assert jnp.allclose(out, out_ref, atol=1e-5, rtol=1e-5)
    assert jnp.allclose(feat, feat_ref, atol=1e-5, rtol=1e-5)

    print("KERNEL_OK")
</pallas_src>

<mosaic_0001>
module attributes {stable_mosaic.version = 11 : i64} {
  func.func @_classifier_kernel(%arg0: i32, %arg1: memref<8x32xf32, #tpu.memory_space<vmem>>, %arg2: memref<32x64xf32, #tpu.memory_space<vmem>>, %arg3: memref<1x64xf32, #tpu.memory_space<vmem>>, %arg4: memref<64x8xf32, #tpu.memory_space<vmem>>, %arg5: memref<1x8xf32, #tpu.memory_space<vmem>>, %arg6: memref<8x8xf32, #tpu.memory_space<vmem>>, %arg7: memref<8x64xf32, #tpu.memory_space<vmem>>) attributes {dimension_semantics = [#tpu.dimension_semantics<parallel>], iteration_bounds = array<i64: 1>, scalar_prefetch = 0 : i64, scratch_operands = 0 : i64, tpu.core_type = #tpu.core_type<tc>, window_params = [{transform_indices = @transform_0, window_bounds = array<i64: 8, 32>}, {pipeline_mode = #tpu.pipeline_mode<synchronous>, transform_indices = @transform_1, window_bounds = array<i64: 32, 64>}, {pipeline_mode = #tpu.pipeline_mode<synchronous>, transform_indices = @transform_2, window_bounds = array<i64: 1, 64>}, {pipeline_mode = #tpu.pipeline_mode<synchronous>, transform_indices = @transform_3, window_bounds = array<i64: 64, 8>}, {pipeline_mode = #tpu.pipeline_mode<synchronous>, transform_indices = @transform_4, window_bounds = array<i64: 1, 8>}, {transform_indices = @transform_5, window_bounds = array<i64: 8, 8>}, {transform_indices = @transform_6, window_bounds = array<i64: 8, 64>}]} {
    %c0 = arith.constant 0 : index
    %c0_0 = arith.constant 0 : index
    %0 = vector.load %arg1[%c0, %c0_0] : memref<8x32xf32, #tpu.memory_space<vmem>>, vector<8x32xf32>
    %c0_1 = arith.constant 0 : index
    %c0_2 = arith.constant 0 : index
    %1 = vector.load %arg2[%c0_1, %c0_2] : memref<32x64xf32, #tpu.memory_space<vmem>>, vector<32x64xf32>
    %cst = arith.constant dense<0.000000e+00> : vector<8x64xf32>
    %2 = tpu.matmul %0, %1, %cst {dimension_numbers = #tpu.dot_dimension_numbers<[1], [0], [0], [1], [0, 0, 1, 1], [], []>} : vector<8x32xf32>, vector<32x64xf32>, vector<8x64xf32> -> vector<8x64xf32>
    %c0_3 = arith.constant 0 : index
    %c0_4 = arith.constant 0 : index
    %3 = vector.load %arg3[%c0_3, %c0_4] : memref<1x64xf32, #tpu.memory_space<vmem>>, vector<1x64xf32>
    %4 = vector.broadcast %3 : vector<1x64xf32> to vector<8x64xf32>
    %5 = arith.addf %2, %4 : vector<8x64xf32>
    %cst_5 = arith.constant 0.000000e+00 : f32
    %6 = vector.broadcast %cst_5 : f32 to vector<8x64xf32>
    %7 = arith.maximumf %5, %6 : vector<8x64xf32>
    %c0_6 = arith.constant 0 : index
    %c0_7 = arith.constant 0 : index
    %8 = vector.load %arg7[%c0_6, %c0_7] : memref<8x64xf32, #tpu.memory_space<vmem>>, vector<8x64xf32>
    tpu.vector_store %arg7[%c0_6, %c0_7], %7 {strides = array<i32>} : memref<8x64xf32, #tpu.memory_space<vmem>>, vector<8x64xf32>,
    %c0_8 = arith.constant 0 : index
    %c0_9 = arith.constant 0 : index
    %9 = vector.load %arg7[%c0_8, %c0_9] : memref<8x64xf32, #tpu.memory_space<vmem>>, vector<8x64xf32>
    %c0_10 = arith.constant 0 : index
    %c0_11 = arith.constant 0 : index
    %10 = vector.load %arg4[%c0_10, %c0_11] : memref<64x8xf32, #tpu.memory_space<vmem>>, vector<64x8xf32>
    %cst_12 = arith.constant dense<0.000000e+00> : vector<8x8xf32>
    %11 = tpu.matmul %9, %10, %cst_12 {dimension_numbers = #tpu.dot_dimension_numbers<[1], [0], [0], [1], [0, 0, 1, 1], [], []>} : vector<8x64xf32>, vector<64x8xf32>, vector<8x8xf32> -> vector<8x8xf32>
    %c0_13 = arith.constant 0 : index
    %c0_14 = arith.constant 0 : index
    %12 = vector.load %arg5[%c0_13, %c0_14] : memref<1x8xf32, #tpu.memory_space<vmem>>, vector<1x8xf32>
    %13 = vector.broadcast %12 : vector<1x8xf32> to vector<8x8xf32>
    %14 = arith.addf %11, %13 : vector<8x8xf32>
    %c0_15 = arith.constant 0 : index
    %c0_16 = arith.constant 0 : index
    %15 = vector.load %arg6[%c0_15, %c0_16] : memref<8x8xf32, #tpu.memory_space<vmem>>, vector<8x8xf32>
    tpu.vector_store %arg6[%c0_15, %c0_16], %14 {strides = array<i32>} : memref<8x8xf32, #tpu.memory_space<vmem>>, vector<8x8xf32>,
    return
  }
  func.func @transform_0(%arg0: i32) -> (i32, i32) {
    %c0_i32 = arith.constant 0 : i32
    %c0_i32_0 = arith.constant 0 : i32
    return %arg0, %c0_i32 : i32, i32
  }
  func.func @transform_1(%arg0: i32) -> (i32, i32) {
    %c0_i32 = arith.constant 0 : i32
    %c0_i32_0 = arith.constant 0 : i32
    %c0_i32_1 = arith.constant 0 : i32
    return %c0_i32, %c0_i32_0 : i32, i32
  }
  func.func @transform_2(%arg0: i32) -> (i32, i32) {
    %c0_i32 = arith.constant 0 : i32
    %c0_i32_0 = arith.constant 0 : i32
    %c0_i32_1 = arith.constant 0 : i32
    return %c0_i32, %c0_i32_0 : i32, i32
  }
  func.func @transform_3(%arg0: i32) -> (i32, i32) {
    %c0_i32 = arith.constant 0 : i32
    %c0_i32_0 = arith.constant 0 : i32
    %c0_i32_1 = arith.constant 0 : i32
    return %c0_i32, %c0_i32_0 : i32, i32
  }
  func.func @transform_4(%arg0: i32) -> (i32, i32) {
    %c0_i32 = arith.constant 0 : i32
    %c0_i32_0 = arith.constant 0 : i32
    %c0_i32_1 = arith.constant 0 : i32
    return %c0_i32, %c0_i32_0 : i32, i32
  }
  func.func @transform_5(%arg0: i32) -> (i32, i32) {
    %c0_i32 = arith.constant 0 : i32
    %c0_i32_0 = arith.constant 0 : i32
    return %arg0, %c0_i32 : i32, i32
  }
  func.func @transform_6(%arg0: i32) -> (i32, i32) {
    %c0_i32 = arith.constant 0 : i32
    %c0_i32_0 = arith.constant 0 : i32
    return %arg0, %c0_i32 : i32, i32
  }
}

module attributes {stable_mosaic.version = 11 : i64} {
  func.func @_classifier_kernel(%arg0: i32, %arg1: memref<8x32xf32, #tpu.memory_space<vmem>>, %arg2: memref<32x64xf32, #tpu.memory_space<vmem>>, %arg3: memref<1x64xf32, #tpu.memory_space<vmem>>, %arg4: memref<64x8xf32, #tpu.memory_space<vmem>>, %arg5: memref<1x8xf32, #tpu.memory_space<vmem>>, %arg6: memref<8x8xf32, #tpu.memory_space<vmem>>, %arg7: memref<8x64xf32, #tpu.memory_space<vmem>>) attributes {dimension_semantics = [#tpu.dimension_semantics<parallel>], iteration_bounds = array<i64: 1>, scalar_prefetch = 0 : i64, scratch_operands = 0 : i64, tpu.core_type = #tpu.core_type<tc>, window_params = [{transform_indices = @transform_0, window_bounds = array<i64: 8, 32>}, {pipeline_mode = #tpu.pipeline_mode<synchronous>, transform_indices = @transform_1, window_bounds = array<i64: 32, 64>}, {pipeline_mode = #tpu.pipeline_mode<synchronous>, transform_indices = @transform_2, window_bounds = array<i64: 1, 64>}, {pipeline_mode = #tpu.pipeline_mode<synchronous>, transform_indices = @transform_3, window_bounds = array<i64: 64, 8>}, {pipeline_mode = #tpu.pipeline_mode<synchronous>, transform_indices = @transform_4, window_bounds = array<i64: 1, 8>}, {transform_indices = @transform_5, window_bounds = array<i64: 8, 8>}, {transform_indices = @transform_6, window_bounds = array<i64: 8, 64>}]} {
    %c0 = arith.constant 0 : index
    %c0_0 = arith.constant 0 : index
    %0 = vector.load %arg1[%c0, %c0_0] : memref<8x32xf32, #tpu.memory_space<vmem>>, vector<8x32xf32>
    %c0_1 = arith.constant 0 : index
    %c0_2 = arith.constant 0 : index
    %1 = vector.load %arg2[%c0_1, %c0_2] : memref<32x64xf32, #tpu.memory_space<vmem>>, vector<32x64xf32>
    %cst = arith.constant dense<0.000000e+00> : vector<8x64xf32>
    %2 = tpu.matmul %0, %1, %cst {dimension_numbers = #tpu.dot_dimension_numbers<[1], [0], [0], [1], [0, 0, 1, 1], [], []>} : vector<8x32xf32>, vector<32x64xf32>, vector<8x64xf32> -> vector<8x64xf32>
    %c0_3 = arith.constant 0 : index
    %c0_4 = arith.constant 0 : index
    %3 = vector.load %arg3[%c0_3, %c0_4] : memref<1x64xf32, #tpu.memory_space<vmem>>, vector<1x64xf32>
    %4 = vector.broadcast %3 : vector<1x64xf32> to vector<8x64xf32>
    %5 = arith.addf %2, %4 : vector<8x64xf32>
    %cst_5 = arith.constant 0.000000e+00 : f32
    %6 = vector.broadcast %cst_5 : f32 to vector<8x64xf32>
    %7 = arith.maximumf %5, %6 : vector<8x64xf32>
    %c0_6 = arith.constant 0 : index
    %c0_7 = arith.constant 0 : index
    %8 = vector.load %arg7[%c0_6, %c0_7] : memref<8x64xf32, #tpu.memory_space<vmem>>, vector<8x64xf32>
    tpu.vector_store %arg7[%c0_6, %c0_7], %7 {strides = array<i32>} : memref<8x64xf32, #tpu.memory_space<vmem>>, vector<8x64xf32>,
    %c0_8 = arith.constant 0 : index
    %c0_9 = arith.constant 0 : index
    %9 = vector.load %arg7[%c0_8, %c0_9] : memref<8x64xf32, #tpu.memory_space<vmem>>, vector<8x64xf32>
    %c0_10 = arith.constant 0 : index
    %c0_11 = arith.constant 0 : index
    %10 = vector.load %arg4[%c0_10, %c0_11] : memref<64x8xf32, #tpu.memory_space<vmem>>, vector<64x8xf32>
    %cst_12 = arith.constant dense<0.000000e+00> : vector<8x8xf32>
    %11 = tpu.matmul %9, %10, %cst_12 {dimension_numbers = #tpu.dot_dimension_numbers<[1], [0], [0], [1], [0, 0, 1, 1], [], []>} : vector<8x64xf32>, vector<64x8xf32>, vector<8x8xf32> -> vector<8x8xf32>
    %c0_13 = arith.constant 0 : index
    %c0_14 = arith.constant 0 : index
    %12 = vector.load %arg5[%c0_13, %c0_14] : memref<1x8xf32, #tpu.memory_space<vmem>>, vector<1x8xf32>
    %13 = vector.broadcast %12 : vector<1x8xf32> to vector<8x8xf32>
    %14 = arith.addf %11, %13 : vector<8x8xf32>
    %c0_15 = arith.constant 0 : index
    %c0_16 = arith.constant 0 : index
    %15 = vector.load %arg6[%c0_15, %c0_16] : memref<8x8xf32, #tpu.memory_space<vmem>>, vector<8x8xf32>
    tpu.vector_store %arg6[%c0_15, %c0_16], %14 {strides = array<i32>} : memref<8x8xf32, #tpu.memory_space<vmem>>, vector<8x8xf32>,
    return
  }
  func.func @transform_0(%arg0: i32) -> (i32, i32) {
    %c0_i32 = arith.constant 0 : i32
    %c0_i32_0 = arith.constant 0 : i32
    return %arg0, %c0_i32 : i32, i32
  }
  func.func @transform_1(%arg0: i32) -> (i32, i32) {
    %c0_i32 = arith.constant 0 : i32
    %c0_i32_0 = arith.constant 0 : i32
    %c0_i32_1 = arith.constant 0 : i32
    return %c0_i32, %c0_i32_0 : i32, i32
  }
  func.func @transform_2(%arg0: i32) -> (i32, i32) {
    %c0_i32 = arith.constant 0 : i32
    %c0_i32_0 = arith.constant 0 : i32
    %c0_i32_1 = arith.constant 0 : i32
    return %c0_i32, %c0_i32_0 : i32, i32
  }
  func.func @transform_3(%arg0: i32) -> (i32, i32) {
    %c0_i32 = arith.constant 0 : i32
    %c0_i32_0 = arith.constant 0 : i32
    %c0_i32_1 = arith.constant 0 : i32
    return %c0_i32, %c0_i32_0 : i32, i32
  }
  func.func @transform_4(%arg0: i32) -> (i32, i32) {
    %c0_i32 = arith.constant 0 : i32
    %c0_i32_0 = arith.constant 0 : i32
    %c0_i32_1 = arith.constant 0 : i32
    return %c0_i32, %c0_i32_0 : i32, i32
  }
  func.func @transform_5(%arg0: i32) -> (i32, i32) {
    %c0_i32 = arith.constant 0 : i32
    %c0_i32_0 = arith.constant 0 : i32
    return %arg0, %c0_i32 : i32, i32
  }
  func.func @transform_6(%arg0: i32) -> (i32, i32) {
    %c0_i32 = arith.constant 0 : i32
    %c0_i32_0 = arith.constant 0 : i32
    return %arg0, %c0_i32 : i32, i32
  }
}

</mosaic_0001>

<llo_original>
// kernel: tpu_custom_call.1
$region0: #{tpu_custom_call.1}
  #allocation0 [shape = 'u32[]', space=smem, size = 0x4, offset = 0x4, fixed_abs, tag = 'smem constant byte address 0x4 - core index']
  #allocation1 [shape = 'u32[144,128]{1,0:T(1,128)}', space=vmem, size = 0x12000, scoped, tag = 'internal scratch']
  %s0 = inlined_call_operand.vmem [shape: f32[8,32], index: 0, kind: input, shape index: {}]
  %s1 = inlined_call_operand.vmem [shape: f32[32,64], index: 1, kind: input, shape index: {}]
  %s2 = inlined_call_operand.vmem [shape: f32[1,64], index: 2, kind: input, shape index: {}]
  %s3 = inlined_call_operand.vmem [shape: f32[64,8], index: 3, kind: input, shape index: {}]
  %s4 = inlined_call_operand.vmem [shape: f32[1,8], index: 4, kind: input, shape index: {}]
  %s5 = inlined_call_operand.hbm [shape: f32[8,8], index: 5, kind: output, shape index: {0}]
  %s6 = inlined_call_operand.hbm [shape: f32[8,64], index: 6, kind: output, shape index: {1}]
  %7 = xla_tuple %s5, %s6
  %s8 = sld [smem:[#allocation0]]
  $region38: #{tpu_custom_call.1} parent=0
    _
  %s10 = ssub.s32 1, %s8
  %s11 = scalar_select 0, %s10, %s8
  $region1: #{tpu_custom_call.1} parent=0
    #allocation2 [shape = 'u8[4096]{0}', space=vmem, size = 0x1000, scoped, tag = 'output window, operand 0, single buffered']
    #allocation3 [shape = 's32[1]{0}', space=sflag, size = 0x4, scoped, tag = 'scoped memory for tpu_custom_call.1']
    #allocation4 [shape = 'u8[4096]{0}', space=vmem, size = 0x1000, scoped, tag = 'output window, operand 1, single buffered']
    #allocation5 [shape = 's32[1]{0}', space=sflag, size = 0x4, scoped, tag = 'scoped memory for tpu_custom_call.1']
    %12 = vsyncpa [#allocation3], 0
    %13 = vsyncpa [#allocation5], 0
    // Predicated region
    $region2: #{tpu_custom_call.1} parent=1 // pred_check
      _
    $region3: #{tpu_custom_call.1} parent=1 // pred_check_branch
      %15 = sbr.rel (0) target = $region5
    $region4: #{tpu_custom_call.1} parent=1 // pred_region
      _
    $region5: #{tpu_custom_call.1} parent=1 // pred_fallthru
      _
    // Predicated region
    $region6: #{tpu_custom_call.1} parent=1 // pred_check
      _
    $region7: #{tpu_custom_call.1} parent=1 // pred_check_branch
      %17 = sbr.rel (0) target = $region9
    $region8: #{tpu_custom_call.1} parent=1 // pred_region
      _
    $region9: #{tpu_custom_call.1} parent=1 // pred_fallthru
      _
    // Predicated region
    $region10: #{tpu_custom_call.1} parent=1 // pred_check
      _
    $region11: #{tpu_custom_call.1} parent=1 // pred_check_branch
      %19 = sbr.rel (0) target = $region13
    $region12: #{tpu_custom_call.1} parent=1 // pred_region
      _
    $region13: #{tpu_custom_call.1} parent=1 // pred_fallthru
      _
    // Predicated region
    $region14: #{tpu_custom_call.1} parent=1 // pred_check
      _
    $region15: #{tpu_custom_call.1} parent=1 // pred_check_branch
      %21 = sbr.rel (0) target = $region17
    $region16: #{tpu_custom_call.1} parent=1 // pred_region
      _
    $region17: #{tpu_custom_call.1} parent=1 // pred_fallthru
      _
    // Predicated region
    $region18: #{tpu_custom_call.1} parent=1 // pred_check
      _
    $region19: #{tpu_custom_call.1} parent=1 // pred_check_branch
      %23 = sbr.rel (0) target = $region21
    $region20: #{tpu_custom_call.1} parent=1 // pred_region
      _
    $region21: #{tpu_custom_call.1} parent=1 // pred_fallthru
      _
    %v24 = vld [vmem:[%s0] sm:$0xff]
    %v25 = vld [vmem:[%s1] sm:$0xff]
    %v26 = vld [vmem:[%s1 + $0x8] sm:$0xff]
    %v27 = vld [vmem:[%s1 + $0x10] sm:$0xff]
    %v28 = vld [vmem:[%s1 + $0x18] sm:$0xff]
    %v29 = vld [vmem:[%s2] sm:$0x1]
    %v31 = vlaneseq
    %v32 = vshrl.u32 %v31, 7
    %v33 = vsub.s32 0, %v32
    %v34 = vrot.slane %v29, %v33
    %vm36 = vcmask 261120
    %v38 = vsel %vm36, %v24, 0
    %40 = vmatprep.subr.mxu0 0.0
    %41 = vmatpush1.msra.mxu0 %v25
    %42 = vmatprep.subr.mxu0 0.0
    %43 = vmatpush1.msra.mxu0 %v26
    %44 = vmatprep.subr.mxu0 0.0
    %45 = vmatpush1.msra.mxu0 %v27
    %46 = vmatprep.subr.mxu0 0.0
    %47 = vmatpush1.msra.mxu0 %v28
    %48 = vmatprep.subr.mxu0 0.0
    %49 = vmatpush1.msra.mxu0 0.0
    %50 = vmatprep.subr.mxu0 0.0
    %51 = vmatpush1.msra.mxu0 0.0
    %52 = vmatprep.subr.mxu0 0.0
    %53 = vmatpush1.msra.mxu0 0.0
    %54 = vmatprep.subr.mxu0 0.0
    %55 = vmatpush1.msra.mxu0 0.0
    %56 = vmatprep.subr.mxu0 0.0
    %57 = vmatpush1.msra.mxu0 0.0
    %58 = vmatprep.subr.mxu0 0.0
    %59 = vmatpush1.msra.mxu0 0.0
    %60 = vmatprep.subr.mxu0 0.0
    %61 = vmatpush1.msra.mxu0 0.0
    %62 = vmatprep.subr.mxu0 0.0
    %63 = vmatpush1.msra.mxu0 0.0
    %64 = vmatprep.subr.mxu0 0.0
    %65 = vmatpush1.msra.mxu0 0.0
    %66 = vmatprep.subr.mxu0 0.0
    %67 = vmatpush1.msra.mxu0 0.0
    %68 = vmatprep.subr.mxu0 0.0
    %69 = vmatpush1.msra.mxu0 0.0
    %70 = vmatprep.subr.mxu0 0.0
    %71 = vmatpush1.msra.mxu0 0.0
    %72 = vmatprep.subr.mxu0 0.0
    %73 = vmatpush1.msra.mxu0 0.0
    %74 = vmatprep.subr.mxu0 0.0
    %75 = vmatpush1.msra.mxu0 0.0
    %76 = vmatprep.subr.mxu0 0.0
    %77 = vmatpush1.msra.mxu0 0.0
    %78 = vmatprep.subr.mxu0 0.0
    %79 = vmatpush1.msra.mxu0 0.0
    %80 = vmatprep.subr.mxu0 0.0
    %81 = vmatpush1.msra.mxu0 0.0
    %82 = vmatprep.subr.mxu0 0.0
    %83 = vmatpush1.msra.mxu0 0.0
    %84 = vmatprep.subr.mxu0 0.0
    %85 = vmatpush1.msra.mxu0 0.0
    %86 = vmatprep.subr.mxu0 0.0
    %87 = vmatpush1.msra.mxu0 0.0
    %88 = vmatprep.subr.mxu0 0.0
    %89 = vmatpush1.msra.mxu0 0.0
    %90 = vmatprep.subr.mxu0 0.0
    %91 = vmatpush1.msra.mxu0 0.0
    %92 = vmatprep.subr.mxu0 0.0
    %93 = vmatpush1.msra.mxu0 0.0
    %94 = vmatprep.subr.mxu0 0.0
    %95 = vmatpush1.msra.mxu0 0.0
    %96 = vmatprep.subr.mxu0 0.0
    %97 = vmatpush1.msra.mxu0 0.0
    %98 = vmatprep.subr.mxu0 0.0
    %99 = vmatpush1.msra.mxu0 0.0
    %100 = vmatprep.subr.mxu0 0.0
    %101 = vmatpush1.msra.mxu0 0.0
    %102 = vmatprep.subr.mxu0 0.0
    %103 = vmatpush1.msra.mxu0 0.0
    %104 = vmatprep.mubr.f32.mxu0 0.0
    %105 = vmatmul.mubr.f32.gmra.mrb[0].mxu0 %v38
    %v106 = vpop.f32.mrb[0].mxu0
    %v107 = vadd.f32 %v34, %v106
    %v108 = vpop.f32.mrb[0].mxu0
    %109 = vdwg.mxu0
    %v110 = vmax.f32 %v107, 0.0
    %vm111 = vcmask 523264
    %112 = vst.msk [vmem:[#allocation4] sm:$0xff] %vm111, %v110
    %v113 = vld [vmem:[#allocation4] sm:$0xff]
    %v114 = vld [vmem:[%s3] sm:$0xff]
    %v115 = vld [vmem:[%s3 + $0x8] sm:$0xff]
    %v116 = vld [vmem:[%s3 + $0x10] sm:$0xff]
    %v117 = vld [vmem:[%s3 + $0x18] sm:$0xff]
    %v118 = vld [vmem:[%s3 + $0x20] sm:$0xff]
    %v119 = vld [vmem:[%s3 + $0x28] sm:$0xff]
    %v120 = vld [vmem:[%s3 + $0x30] sm:$0xff]
    %v121 = vld [vmem:[%s3 + $0x38] sm:$0xff]
    %v122 = vld [vmem:[%s4] sm:$0x1]
    %v124 = vlaneseq
    %v125 = vshrl.u32 %v124, 7
    %v126 = vsub.s32 0, %v125
    %v127 = vrot.slane %v122, %v126
    %v130 = vsel %vm111, %v113, 0
    %132 = vmatprep.subr.mxu0 0.0
    %133 = vmatpush1.msra.mxu0 %v114
    %134 = vmatprep.subr.mxu0 0.0
    %135 = vmatpush1.msra.mxu0 %v115
    %136 = vmatprep.subr.mxu0 0.0
    %137 = vmatpush1.msra.mxu0 %v116
    %138 = vmatprep.subr.mxu0 0.0
    %139 = vmatpush1.msra.mxu0 %v117
    %140 = vmatprep.subr.mxu0 0.0
    %141 = vmatpush1.msra.mxu0 %v118
    %142 = vmatprep.subr.mxu0 0.0
    %143 = vmatpush1.msra.mxu0 %v119
    %144 = vmatprep.subr.mxu0 0.0
    %145 = vmatpush1.msra.mxu0 %v120
    %146 = vmatprep.subr.mxu0 0.0
    %147 = vmatpush1.msra.mxu0 %v121
    %148 = vmatprep.subr.mxu0 0.0
    %149 = vmatpush1.msra.mxu0 0.0
    %150 = vmatprep.subr.mxu0 0.0
    %151 = vmatpush1.msra.mxu0 0.0
    %152 = vmatprep.subr.mxu0 0.0
    %153 = vmatpush1.msra.mxu0 0.0
    %154 = vmatprep.subr.mxu0 0.0
    %155 = vmatpush1.msra.mxu0 0.0
    %156 = vmatprep.subr.mxu0 0.0
    %157 = vmatpush1.msra.mxu0 0.0
    %158 = vmatprep.subr.mxu0 0.0
    %159 = vmatpush1.msra.mxu0 0.0
    %160 = vmatprep.subr.mxu0 0.0
    %161 = vmatpush1.msra.mxu0 0.0
    %162 = vmatprep.subr.mxu0 0.0
    %163 = vmatpush1.msra.mxu0 0.0
    %164 = vmatprep.subr.mxu0 0.0
    %165 = vmatpush1.msra.mxu0 0.0
    %166 = vmatprep.subr.mxu0 0.0
    %167 = vmatpush1.msra.mxu0 0.0
    %168 = vmatprep.subr.mxu0 0.0
    %169 = vmatpush1.msra.mxu0 0.0
    %170 = vmatprep.subr.mxu0 0.0
    %171 = vmatpush1.msra.mxu0 0.0
    %172 = vmatprep.subr.mxu0 0.0
    %173 = vmatpush1.msra.mxu0 0.0
    %174 = vmatprep.subr.mxu0 0.0
    %175 = vmatpush1.msra.mxu0 0.0
    %176 = vmatprep.subr.mxu0 0.0
    %177 = vmatpush1.msra.mxu0 0.0
    %178 = vmatprep.subr.mxu0 0.0
    %179 = vmatpush1.msra.mxu0 0.0
    %180 = vmatprep.subr.mxu0 0.0
    %181 = vmatpush1.msra.mxu0 0.0
    %182 = vmatprep.subr.mxu0 0.0
    %183 = vmatpush1.msra.mxu0 0.0
    %184 = vmatprep.subr.mxu0 0.0
    %185 = vmatpush1.msra.mxu0 0.0
    %186 = vmatprep.subr.mxu0 0.0
    %187 = vmatpush1.msra.mxu0 0.0
    %188 = vmatprep.subr.mxu0 0.0
    %189 = vmatpush1.msra.mxu0 0.0
    %190 = vmatprep.subr.mxu0 0.0
    %191 = vmatpush1.msra.mxu0 0.0
    %192 = vmatprep.subr.mxu0 0.0
    %193 = vmatpush1.msra.mxu0 0.0
    %194 = vmatprep.subr.mxu0 0.0
    %195 = vmatpush1.msra.mxu0 0.0
    %196 = vmatprep.mubr.f32.mxu0 0.0
    %197 = vmatmul.mubr.f32.gmra.mrb[0].mxu0 %v130
    %v198 = vpop.f32.mrb[0].mxu0
    %v199 = vadd.f32 %v127, %v198
    %v200 = vpop.f32.mrb[0].mxu0
    %201 = vdwg.mxu0
    %vm202 = vcmask 64512
    %203 = vst.msk [vmem:[#allocation2] sm:$0xff] %vm202, %v199
    // Predicated region
    $region22: #{tpu_custom_call.1} parent=1 // pred_check
      _
    $region23: #{tpu_custom_call.1} parent=1 // pred_check_branch
      %205 = sbr.rel (0) target = $region25
    $region24: #{tpu_custom_call.1} parent=1 // pred_region
      %s207 = ssub.s32 128, 128
      %208 = vsyncadd [#allocation3], %s207
      %s210 = sshll.u32 [#allocation2], 4
      %s211 = int_to_ptr.vmem [resolvable:$true] %s210
      %213 = dma.vmem_to_hbm [thread:$0]  %s211, 128, %s5, [#allocation3]
    $region25: #{tpu_custom_call.1} parent=1 // pred_fallthru
      _
    // Predicated region
    $region26: #{tpu_custom_call.1} parent=1 // pred_check
      _
    $region27: #{tpu_custom_call.1} parent=1 // pred_check_branch
      %215 = sbr.rel (0) target = $region29
    $region28: #{tpu_custom_call.1} parent=1 // pred_region
      %s217 = ssub.s32 128, 128
      %218 = vsyncadd [#allocation5], %s217
      %s220 = sshll.u32 [#allocation4], 4
      %s221 = int_to_ptr.vmem [resolvable:$true] %s220
      %223 = dma.vmem_to_hbm [thread:$0]  %s221, 128, %s6, [#allocation5]
    $region29: #{tpu_custom_call.1} parent=1 // pred_fallthru
      _
    // Predicated region
    $region30: #{tpu_custom_call.1} parent=1 // pred_check
      _
    $region31: #{tpu_custom_call.1} parent=1 // pred_check_branch
      %225 = sbr.rel (0) target = $region33
    $region32: #{tpu_custom_call.1} parent=1 // pred_region
      %226 = dma.done [#allocation3], 128
    $region33: #{tpu_custom_call.1} parent=1 // pred_fallthru
      _
    // Predicated region
    $region34: #{tpu_custom_call.1} parent=1 // pred_check
      _
    $region35: #{tpu_custom_call.1} parent=1 // pred_check_branch
      %228 = sbr.rel (0) target = $region37
    $region36: #{tpu_custom_call.1} parent=1 // pred_region
      %229 = dma.done [#allocation5], 128
    $region37: #{tpu_custom_call.1} parent=1 // pred_fallthru
      _
    %230 = vsyncpa [#allocation3], 1
    %231 = vsyncpa [#allocation5], 1

// kernel: tpu_custom_call.1
$region0: #{tpu_custom_call.1}
  #allocation0 [shape = 'u32[]', space=smem, size = 0x4, offset = 0x4, fixed_abs, tag = 'smem constant byte address 0x4 - core index']
  #allocation1 [shape = 'u32[144,128]{1,0:T(1,128)}', space=vmem, size = 0x12000, scoped, tag = 'internal scratch']
  %s0 = inlined_call_operand.vmem [shape: f32[8,32], index: 0, kind: input, shape index: {}]
  %s1 = inlined_call_operand.vmem [shape: f32[32,64], index: 1, kind: input, shape index: {}]
  %s2 = inlined_call_operand.vmem [shape: f32[1,64], index: 2, kind: input, shape index: {}]
  %s3 = inlined_call_operand.vmem [shape: f32[64,8], index: 3, kind: input, shape index: {}]
  %s4 = inlined_call_operand.vmem [shape: f32[1,8], index: 4, kind: input, shape index: {}]
  %s5 = inlined_call_operand.hbm [shape: f32[8,8], index: 5, kind: output, shape index: {0}]
  %s6 = inlined_call_operand.hbm [shape: f32[8,64], index: 6, kind: output, shape index: {1}]
  %7 = xla_tuple %s5, %s6
  %s8 = sld [smem:[#allocation0]]
  $region38: #{tpu_custom_call.1} parent=0
    _
  %s10 = ssub.s32 1, %s8
  %s11 = scalar_select 0, %s10, %s8
  $region1: #{tpu_custom_call.1} parent=0
    #allocation2 [shape = 'u8[4096]{0}', space=vmem, size = 0x1000, scoped, tag = 'output window, operand 0, single buffered']
    #allocation3 [shape = 's32[1]{0}', space=sflag, size = 0x4, scoped, tag = 'scoped memory for tpu_custom_call.1']
    #allocation4 [shape = 'u8[4096]{0}', space=vmem, size = 0x1000, scoped, tag = 'output window, operand 1, single buffered']
    #allocation5 [shape = 's32[1]{0}', space=sflag, size = 0x4, scoped, tag = 'scoped memory for tpu_custom_call.1']
    %12 = vsyncpa [#allocation3], 0
    %13 = vsyncpa [#allocation5], 0
    // Predicated region
    $region2: #{tpu_custom_call.1} parent=1 // pred_check
      _
    $region3: #{tpu_custom_call.1} parent=1 // pred_check_branch
      %15 = sbr.rel (0) target = $region5
    $region4: #{tpu_custom_call.1} parent=1 // pred_region
      _
    $region5: #{tpu_custom_call.1} parent=1 // pred_fallthru
      _
    // Predicated region
    $region6: #{tpu_custom_call.1} parent=1 // pred_check
      _
    $region7: #{tpu_custom_call.1} parent=1 // pred_check_branch
      %17 = sbr.rel (0) target = $region9
    $region8: #{tpu_custom_call.1} parent=1 // pred_region
      _
    $region9: #{tpu_custom_call.1} parent=1 // pred_fallthru
      _
    // Predicated region
    $region10: #{tpu_custom_call.1} parent=1 // pred_check
      _
    $region11: #{tpu_custom_call.1} parent=1 // pred_check_branch
      %19 = sbr.rel (0) target = $region13
    $region12: #{tpu_custom_call.1} parent=1 // pred_region
      _
    $region13: #{tpu_custom_call.1} parent=1 // pred_fallthru
      _
    // Predicated region
    $region14: #{tpu_custom_call.1} parent=1 // pred_check
      _
    $region15: #{tpu_custom_call.1} parent=1 // pred_check_branch
      %21 = sbr.rel (0) target = $region17
    $region16: #{tpu_custom_call.1} parent=1 // pred_region
      _
    $region17: #{tpu_custom_call.1} parent=1 // pred_fallthru
      _
    // Predicated region
    $region18: #{tpu_custom_call.1} parent=1 // pred_check
      _
    $region19: #{tpu_custom_call.1} parent=1 // pred_check_branch
      %23 = sbr.rel (0) target = $region21
    $region20: #{tpu_custom_call.1} parent=1 // pred_region
      _
    $region21: #{tpu_custom_call.1} parent=1 // pred_fallthru
      _
    %v24 = vld [vmem:[%s0] sm:$0xff]
    %v25 = vld [vmem:[%s1] sm:$0xff]
    %v26 = vld [vmem:[%s1 + $0x8] sm:$0xff]
    %v27 = vld [vmem:[%s1 + $0x10] sm:$0xff]
    %v28 = vld [vmem:[%s1 + $0x18] sm:$0xff]
    %v29 = vld [vmem:[%s2] sm:$0x1]
    %v31 = vlaneseq
    %v32 = vshrl.u32 %v31, 7
    %v33 = vsub.s32 0, %v32
    %v34 = vrot.slane %v29, %v33
    %vm36 = vcmask 261120
    %v38 = vsel %vm36, %v24, 0
    %40 = vmatprep.subr.mxu0 0.0
    %41 = vmatpush1.msra.mxu0 %v25
    %42 = vmatprep.subr.mxu0 0.0
    %43 = vmatpush1.msra.mxu0 %v26
    %44 = vmatprep.subr.mxu0 0.0
    %45 = vmatpush1.msra.mxu0 %v27
    %46 = vmatprep.subr.mxu0 0.0
    %47 = vmatpush1.msra.mxu0 %v28
    %48 = vmatprep.subr.mxu0 0.0
    %49 = vmatpush1.msra.mxu0 0.0
    %50 = vmatprep.subr.mxu0 0.0
    %51 = vmatpush1.msra.mxu0 0.0
    %52 = vmatprep.subr.mxu0 0.0
    %53 = vmatpush1.msra.mxu0 0.0
    %54 = vmatprep.subr.mxu0 0.0
    %55 = vmatpush1.msra.mxu0 0.0
    %56 = vmatprep.subr.mxu0 0.0
    %57 = vmatpush1.msra.mxu0 0.0
    %58 = vmatprep.subr.mxu0 0.0
    %59 = vmatpush1.msra.mxu0 0.0
    %60 = vmatprep.subr.mxu0 0.0
    %61 = vmatpush1.msra.mxu0 0.0
    %62 = vmatprep.subr.mxu0 0.0
    %63 = vmatpush1.msra.mxu0 0.0
    %64 = vmatprep.subr.mxu0 0.0
    %65 = vmatpush1.msra.mxu0 0.0
    %66 = vmatprep.subr.mxu0 0.0
    %67 = vmatpush1.msra.mxu0 0.0
    %68 = vmatprep.subr.mxu0 0.0
    %69 = vmatpush1.msra.mxu0 0.0
    %70 = vmatprep.subr.mxu0 0.0
    %71 = vmatpush1.msra.mxu0 0.0
    %72 = vmatprep.subr.mxu0 0.0
    %73 = vmatpush1.msra.mxu0 0.0
    %74 = vmatprep.subr.mxu0 0.0
    %75 = vmatpush1.msra.mxu0 0.0
    %76 = vmatprep.subr.mxu0 0.0
    %77 = vmatpush1.msra.mxu0 0.0
    %78 = vmatprep.subr.mxu0 0.0
    %79 = vmatpush1.msra.mxu0 0.0
    %80 = vmatprep.subr.mxu0 0.0
    %81 = vmatpush1.msra.mxu0 0.0
    %82 = vmatprep.subr.mxu0 0.0
    %83 = vmatpush1.msra.mxu0 0.0
    %84 = vmatprep.subr.mxu0 0.0
    %85 = vmatpush1.msra.mxu0 0.0
    %86 = vmatprep.subr.mxu0 0.0
    %87 = vmatpush1.msra.mxu0 0.0
    %88 = vmatprep.subr.mxu0 0.0
    %89 = vmatpush1.msra.mxu0 0.0
    %90 = vmatprep.subr.mxu0 0.0
    %91 = vmatpush1.msra.mxu0 0.0
    %92 = vmatprep.subr.mxu0 0.0
    %93 = vmatpush1.msra.mxu0 0.0
    %94 = vmatprep.subr.mxu0 0.0
    %95 = vmatpush1.msra.mxu0 0.0
    %96 = vmatprep.subr.mxu0 0.0
    %97 = vmatpush1.msra.mxu0 0.0
    %98 = vmatprep.subr.mxu0 0.0
    %99 = vmatpush1.msra.mxu0 0.0
    %100 = vmatprep.subr.mxu0 0.0
    %101 = vmatpush1.msra.mxu0 0.0
    %102 = vmatprep.subr.mxu0 0.0
    %103 = vmatpush1.msra.mxu0 0.0
    %104 = vmatprep.mubr.f32.mxu0 0.0
    %105 = vmatmul.mubr.f32.gmra.mrb[0].mxu0 %v38
    %v106 = vpop.f32.mrb[0].mxu0
    %v107 = vadd.f32 %v34, %v106
    %v108 = vpop.f32.mrb[0].mxu0
    %109 = vdwg.mxu0
    %v110 = vmax.f32 %v107, 0.0
    %vm111 = vcmask 523264
    %112 = vst.msk [vmem:[#allocation4] sm:$0xff] %vm111, %v110
    %v113 = vld [vmem:[#allocation4] sm:$0xff]
    %v114 = vld [vmem:[%s3] sm:$0xff]
    %v115 = vld [vmem:[%s3 + $0x8] sm:$0xff]
    %v116 = vld [vmem:[%s3 + $0x10] sm:$0xff]
    %v117 = vld [vmem:[%s3 + $0x18] sm:$0xff]
    %v118 = vld [vmem:[%s3 + $0x20] sm:$0xff]
    %v119 = vld [vmem:[%s3 + $0x28] sm:$0xff]
    %v120 = vld [vmem:[%s3 + $0x30] sm:$0xff]
    %v121 = vld [vmem:[%s3 + $0x38] sm:$0xff]
    %v122 = vld [vmem:[%s4] sm:$0x1]
    %v124 = vlaneseq
    %v125 = vshrl.u32 %v124, 7
    %v126 = vsub.s32 0, %v125
    %v127 = vrot.slane %v122, %v126
    %v130 = vsel %vm111, %v113, 0
    %132 = vmatprep.subr.mxu0 0.0
    %133 = vmatpush1.msra.mxu0 %v114
    %134 = vmatprep.subr.mxu0 0.0
    %135 = vmatpush1.msra.mxu0 %v115
    %136 = vmatprep.subr.mxu0 0.0
    %137 = vmatpush1.msra.mxu0 %v116
    %138 = vmatprep.subr.mxu0 0.0
    %139 = vmatpush1.msra.mxu0 %v117
    %140 = vmatprep.subr.mxu0 0.0
    %141 = vmatpush1.msra.mxu0 %v118
    %142 = vmatprep.subr.mxu0 0.0
    %143 = vmatpush1.msra.mxu0 %v119
    %144 = vmatprep.subr.mxu0 0.0
    %145 = vmatpush1.msra.mxu0 %v120
    %146 = vmatprep.subr.mxu0 0.0
    %147 = vmatpush1.msra.mxu0 %v121
    %148 = vmatprep.subr.mxu0 0.0
    %149 = vmatpush1.msra.mxu0 0.0
    %150 = vmatprep.subr.mxu0 0.0
    %151 = vmatpush1.msra.mxu0 0.0
    %152 = vmatprep.subr.mxu0 0.0
    %153 = vmatpush1.msra.mxu0 0.0
    %154 = vmatprep.subr.mxu0 0.0
    %155 = vmatpush1.msra.mxu0 0.0
    %156 = vmatprep.subr.mxu0 0.0
    %157 = vmatpush1.msra.mxu0 0.0
    %158 = vmatprep.subr.mxu0 0.0
    %159 = vmatpush1.msra.mxu0 0.0
    %160 = vmatprep.subr.mxu0 0.0
    %161 = vmatpush1.msra.mxu0 0.0
    %162 = vmatprep.subr.mxu0 0.0
    %163 = vmatpush1.msra.mxu0 0.0
    %164 = vmatprep.subr.mxu0 0.0
    %165 = vmatpush1.msra.mxu0 0.0
    %166 = vmatprep.subr.mxu0 0.0
    %167 = vmatpush1.msra.mxu0 0.0
    %168 = vmatprep.subr.mxu0 0.0
    %169 = vmatpush1.msra.mxu0 0.0
    %170 = vmatprep.subr.mxu0 0.0
    %171 = vmatpush1.msra.mxu0 0.0
    %172 = vmatprep.subr.mxu0 0.0
    %173 = vmatpush1.msra.mxu0 0.0
    %174 = vmatprep.subr.mxu0 0.0
    %175 = vmatpush1.msra.mxu0 0.0
    %176 = vmatprep.subr.mxu0 0.0
    %177 = vmatpush1.msra.mxu0 0.0
    %178 = vmatprep.subr.mxu0 0.0
    %179 = vmatpush1.msra.mxu0 0.0
    %180 = vmatprep.subr.mxu0 0.0
    %181 = vmatpush1.msra.mxu0 0.0
    %182 = vmatprep.subr.mxu0 0.0
    %183 = vmatpush1.msra.mxu0 0.0
    %184 = vmatprep.subr.mxu0 0.0
    %185 = vmatpush1.msra.mxu0 0.0
    %186 = vmatprep.subr.mxu0 0.0
    %187 = vmatpush1.msra.mxu0 0.0
    %188 = vmatprep.subr.mxu0 0.0
    %189 = vmatpush1.msra.mxu0 0.0
    %190 = vmatprep.subr.mxu0 0.0
    %191 = vmatpush1.msra.mxu0 0.0
    %192 = vmatprep.subr.mxu0 0.0
    %193 = vmatpush1.msra.mxu0 0.0
    %194 = vmatprep.subr.mxu0 0.0
    %195 = vmatpush1.msra.mxu0 0.0
    %196 = vmatprep.mubr.f32.mxu0 0.0
    %197 = vmatmul.mubr.f32.gmra.mrb[0].mxu0 %v130
    %v198 = vpop.f32.mrb[0].mxu0
    %v199 = vadd.f32 %v127, %v198
    %v200 = vpop.f32.mrb[0].mxu0
    %201 = vdwg.mxu0
    %vm202 = vcmask 64512
    %203 = vst.msk [vmem:[#allocation2] sm:$0xff] %vm202, %v199
    // Predicated region
    $region22: #{tpu_custom_call.1} parent=1 // pred_check
      _
    $region23: #{tpu_custom_call.1} parent=1 // pred_check_branch
      %205 = sbr.rel (0) target = $region25
    $region24: #{tpu_custom_call.1} parent=1 // pred_region
      %s207 = ssub.s32 128, 128
      %208 = vsyncadd [#allocation3], %s207
      %s210 = sshll.u32 [#allocation2], 4
      %s211 = int_to_ptr.vmem [resolvable:$true] %s210
      %213 = dma.vmem_to_hbm [thread:$0]  %s211, 128, %s5, [#allocation3]
    $region25: #{tpu_custom_call.1} parent=1 // pred_fallthru
      _
    // Predicated region
    $region26: #{tpu_custom_call.1} parent=1 // pred_check
      _
    $region27: #{tpu_custom_call.1} parent=1 // pred_check_branch
      %215 = sbr.rel (0) target = $region29
    $region28: #{tpu_custom_call.1} parent=1 // pred_region
      %s217 = ssub.s32 128, 128
      %218 = vsyncadd [#allocation5], %s217
      %s220 = sshll.u32 [#allocation4], 4
      %s221 = int_to_ptr.vmem [resolvable:$true] %s220
      %223 = dma.vmem_to_hbm [thread:$0]  %s221, 128, %s6, [#allocation5]
    $region29: #{tpu_custom_call.1} parent=1 // pred_fallthru
      _
    // Predicated region
    $region30: #{tpu_custom_call.1} parent=1 // pred_check
      _
    $region31: #{tpu_custom_call.1} parent=1 // pred_check_branch
      %225 = sbr.rel (0) target = $region33
    $region32: #{tpu_custom_call.1} parent=1 // pred_region
      %226 = dma.done [#allocation3], 128
    $region33: #{tpu_custom_call.1} parent=1 // pred_fallthru
      _
    // Predicated region
    $region34: #{tpu_custom_call.1} parent=1 // pred_check
      _
    $region35: #{tpu_custom_call.1} parent=1 // pred_check_branch
      %228 = sbr.rel (0) target = $region37
    $region36: #{tpu_custom_call.1} parent=1 // pred_region
      %229 = dma.done [#allocation5], 128
    $region37: #{tpu_custom_call.1} parent=1 // pred_fallthru
      _
    %230 = vsyncpa [#allocation3], 1
    %231 = vsyncpa [#allocation5], 1

</llo_original>
